<compile_context>
chip_gen: v7x
topology: tpu7x:2x2x1
jax: 0.10.0
libtpu: 0.0.40
codegen_flags: <defaults>
</compile_context>

<pallas_src>
import jax
import jax.numpy as jnp
from jax.experimental import pallas as pl
from jax.experimental.pallas import tpu as pltpu


def _motion_inspection_kernel(x_ref, halo_ref, w_ref, b_ref, out_ref):
    # x_ref:    (1, C, TL)     input tile in native NCL layout (L on lanes)
    # halo_ref: (1, 1, C, 2)   [left, right] neighbour columns (zero at edges)
    # w_ref:    (2C, 3C)       fused conv1+conv2 weight, columns = (tap, ci)
    # b_ref:    (2C, 1)        fused bias
    # out_ref:  (1, 3C, TL)    [x | conv1(x) | conv2(x)] along the channel axis
    C = x_ref.shape[1]
    TL = x_ref.shape[2]

    x = x_ref[0]                               # (C, TL)  centre tap / pass-through
    left = halo_ref[0, 0, :, 0:1]              # (C, 1)   x[:, tile_start - 1]
    right = halo_ref[0, 0, :, 1:2]             # (C, 1)   x[:, tile_end]

    # Shifted views of the tile; slice the ref so the unaligned lane offset is
    # handled by the vector-load unit rather than an XLU rotate of a value.
    x_lm1 = jnp.concatenate([left, x_ref[0, :, 0:TL - 1]], axis=1)   # x[:, t-1]
    x_lp1 = jnp.concatenate([x_ref[0, :, 1:TL], right], axis=1)      # x[:, t+1]

    # Stack the 3 taps along the contraction axis -> a single MXU matmul.
    xs = jnp.concatenate([x_lm1, x, x_lp1], axis=0)                  # (3C, TL)

    acc = jnp.broadcast_to(b_ref[...], (b_ref.shape[0], TL)).astype(jnp.float32)
    acc = acc + jnp.dot(w_ref[...], xs, preferred_element_type=jnp.float32)

    # Full-lane stores in the final layout (no wrapper concat/transpose needed).
    out_ref[0, 0:C, :] = x                                 # identity pass-through
    out_ref[0, C:, :] = acc.astype(out_ref.dtype)          # conv1 | conv2


def _pick_l_tile(L, C):
    """Pick an L tile: whole sequence if small, else the largest multiple-of-128
    divisor of L whose f32 (input + output) block stays within ~2 MiB, so
    double-buffered pipelining fits default scoped VMEM on v5e/v6e/v7x."""
    budget_cols = (2 * 1024 * 1024) // (4 * 4 * C)   # 4 B * (C in + 3C out) per col
    if L <= max(budget_cols, 128) or L % 128 != 0:
        return L
    tl = max(128, min(L, (budget_cols // 128) * 128))
    while tl >= 128:
        if L % tl == 0:
            return tl
        tl -= 128
    return L


def motion_inspection(x, w1, b1, w2, b2, *, l_tile=None):
    """x: (N, C, L) f32 (PyTorch NCL); w*: (C, C, 3) torch Conv1d weights; b*: (C,).
    Returns (N, 3C, L) = cat([x, conv1(x), conv2(x)], dim=1)."""
    N, C, L = x.shape

    # Fuse the two convolutions: weight (2C, 3C) with column index = tap*C + ci.
    w_cat = jnp.concatenate([w1, w2], axis=0)                        # (2C, C, 3)
    w_fused = jnp.transpose(w_cat, (0, 2, 1)).reshape(2 * C, 3 * C)  # (2C, 3C)
    b_fused = jnp.concatenate([b1, b2], axis=0).reshape(2 * C, 1)    # (2C, 1)

    if l_tile is None:
        l_tile = _pick_l_tile(L, C)
    if L % l_tile != 0:
        l_tile = L
    num_l = L // l_tile

    # Tiny per-tile halo columns (left / right neighbours, zero at sequence
    # edges) -- avoids padding/copying the full x in HBM.
    if num_l == 1:
        halos = jnp.zeros((N, 1, C, 2), dtype=x.dtype)
    else:
        zeros_col = jnp.zeros((N, C, 1), dtype=x.dtype)
        lefts = jnp.concatenate(
            [zeros_col, x[:, :, l_tile - 1::l_tile][:, :, : num_l - 1]], axis=2)  # (N, C, num_l)
        rights = jnp.concatenate(
            [x[:, :, l_tile::l_tile], zeros_col], axis=2)                          # (N, C, num_l)
        halos = jnp.transpose(jnp.stack([lefts, rights], axis=-1), (0, 2, 1, 3))   # (N, num_l, C, 2)

    out = pl.pallas_call(
        _motion_inspection_kernel,
        out_shape=jax.ShapeDtypeStruct((N, 3 * C, L), x.dtype),
        grid_spec=pltpu.PrefetchScalarGridSpec(
            num_scalar_prefetch=0,
            grid=(N, num_l),
            in_specs=[
                pl.BlockSpec((1, C, l_tile), lambda n, l: (n, 0, l)),
                pl.BlockSpec((1, 1, C, 2), lambda n, l: (n, l, 0, 0)),
                # Weights/bias: constant block index (tiny; re-fetch cost negligible).
                pl.BlockSpec((2 * C, 3 * C), lambda n, l: (0, 0)),
                pl.BlockSpec((2 * C, 1), lambda n, l: (0, 0)),
            ],
            out_specs=pl.BlockSpec((1, 3 * C, l_tile), lambda n, l: (n, 0, l)),
        ),
        compiler_params=pltpu.CompilerParams(
            # Both axes independent -> megacore sharding on v7x even for small N.
            dimension_semantics=("parallel", "parallel")),
    )(x, halos, w_fused, b_fused)
    return out


def _reference(x_ncl, w1, b1, w2, b2):
    """Pure-JAX reference matching nn.Conv1d(k=3, padding=1) + concat."""
    def conv1d(x, w, b):
        y = jax.lax.conv_general_dilated(
            x, w, window_strides=(1,), padding=((1, 1),),
            dimension_numbers=("NCH", "OIH", "NCH"))
        return y + b[None, :, None]
    return jnp.concatenate([x_ncl, conv1d(x_ncl, w1, b1), conv1d(x_ncl, w2, b2)], axis=1)


if __name__ == "__main__":
    key = jax.random.PRNGKey(0)

    def make_case(k, N, C, L):
        kx, k1, k2, k3, k4 = jax.random.split(k, 5)
        x = jax.random.normal(kx, (N, C, L), dtype=jnp.float32)
        w1 = jax.random.normal(k1, (C, C, 3), dtype=jnp.float32) * 0.1
        b1 = jax.random.normal(k2, (C,), dtype=jnp.float32) * 0.1
        w2 = jax.random.normal(k3, (C, C, 3), dtype=jnp.float32) * 0.1
        b2 = jax.random.normal(k4, (C,), dtype=jnp.float32) * 0.1
        return x, w1, b1, w2, b2

    k_a, k_b = jax.random.split(key)

    # Case 1: module-sized small shapes (single L tile).
    x, w1, b1, w2, b2 = make_case(k_a, 2, 4, 16)
    out = jax.block_until_ready(motion_inspection(x, w1, b1, w2, b2))
    ref = _reference(x, w1, b1, w2, b2)
    assert out.shape == (2, 12, 16), out.shape
    assert jnp.allclose(out, ref, atol=1e-4, rtol=1e-4), "mismatch vs reference (case 1)"

    # Case 2: exercises the L-tiled halo path and both parallel grid axes.
    x, w1, b1, w2, b2 = make_case(k_b, 2, 8, 256)
    out = jax.block_until_ready(motion_inspection(x, w1, b1, w2, b2, l_tile=128))
    ref = _reference(x, w1, b1, w2, b2)
    assert out.shape == (2, 24, 256), out.shape
    assert jnp.allclose(out, ref, atol=1e-4, rtol=1e-4), "mismatch vs reference (case 2)"

    print("KERNEL_OK")
</pallas_src>

<mosaic_0001>
module attributes {stable_mosaic.version = 11 : i64} {
  func.func @_motion_inspection_kernel(%arg0: i32, %arg1: i32, %arg2: memref<1x4x16xf32, #tpu.memory_space<vmem>>, %arg3: memref<1x1x4x2xf32, #tpu.memory_space<vmem>>, %arg4: memref<8x12xf32, #tpu.memory_space<vmem>>, %arg5: memref<8x1xf32, #tpu.memory_space<vmem>>, %arg6: memref<1x12x16xf32, #tpu.memory_space<vmem>>) attributes {dimension_semantics = [#tpu.dimension_semantics<parallel>, #tpu.dimension_semantics<parallel>], iteration_bounds = array<i64: 2, 1>, scalar_prefetch = 0 : i64, scratch_operands = 0 : i64, tpu.core_type = #tpu.core_type<tc>, window_params = [{transform_indices = @transform_0, window_bounds = array<i64: 1, 4, 16>}, {transform_indices = @transform_1, window_bounds = array<i64: 1, 1, 4, 2>}, {pipeline_mode = #tpu.pipeline_mode<synchronous>, transform_indices = @transform_2, window_bounds = array<i64: 8, 12>}, {pipeline_mode = #tpu.pipeline_mode<synchronous>, transform_indices = @transform_3, window_bounds = array<i64: 8, 1>}, {transform_indices = @transform_4, window_bounds = array<i64: 1, 12, 16>}]} {
    %c0 = arith.constant 0 : index
    %c0_0 = arith.constant 0 : index
    %c0_1 = arith.constant 0 : index
    %0 = vector.load %arg2[%c0, %c0_0, %c0_1] : memref<1x4x16xf32, #tpu.memory_space<vmem>>, vector<1x4x16xf32>
    %1 = vector.shape_cast %0 : vector<1x4x16xf32> to vector<4x16xf32>
    %c0_2 = arith.constant 0 : index
    %c0_3 = arith.constant 0 : index
    %c0_4 = arith.constant 0 : index
    %c0_5 = arith.constant 0 : index
    %2 = vector.load %arg3[%c0_2, %c0_3, %c0_4, %c0_5] : memref<1x1x4x2xf32, #tpu.memory_space<vmem>>, vector<1x1x4x1xf32>
    %3 = vector.shape_cast %2 : vector<1x1x4x1xf32> to vector<4x1xf32>
    %c0_6 = arith.constant 0 : index
    %c0_7 = arith.constant 0 : index
    %c0_8 = arith.constant 0 : index
    %c1 = arith.constant 1 : index
    %4 = vector.load %arg3[%c0_6, %c0_7, %c0_8, %c1] : memref<1x1x4x2xf32, #tpu.memory_space<vmem>>, vector<1x1x4x1xf32>
    %5 = vector.shape_cast %4 : vector<1x1x4x1xf32> to vector<4x1xf32>
    %c0_9 = arith.constant 0 : index
    %c0_10 = arith.constant 0 : index
    %c0_11 = arith.constant 0 : index
    %6 = vector.load %arg2[%c0_9, %c0_10, %c0_11] : memref<1x4x16xf32, #tpu.memory_space<vmem>>, vector<1x4x15xf32>
    %7 = vector.shape_cast %6 : vector<1x4x15xf32> to vector<4x15xf32>
    %8 = tpu.concatenate %3, %7 in 1 : vector<4x1xf32>, vector<4x15xf32> -> vector<4x16xf32>
    %c0_12 = arith.constant 0 : index
    %c0_13 = arith.constant 0 : index
    %c1_14 = arith.constant 1 : index
    %9 = vector.load %arg2[%c0_12, %c0_13, %c1_14] : memref<1x4x16xf32, #tpu.memory_space<vmem>>, vector<1x4x15xf32>
    %10 = vector.shape_cast %9 : vector<1x4x15xf32> to vector<4x15xf32>
    %11 = tpu.concatenate %10, %5 in 1 : vector<4x15xf32>, vector<4x1xf32> -> vector<4x16xf32>
    %12 = tpu.concatenate %8, %1, %11 in 0 : vector<4x16xf32>, vector<4x16xf32>, vector<4x16xf32> -> vector<12x16xf32>
    %c0_15 = arith.constant 0 : index
    %c0_16 = arith.constant 0 : index
    %13 = vector.load %arg5[%c0_15, %c0_16] : memref<8x1xf32, #tpu.memory_space<vmem>>, vector<8x1xf32>
    %14 = vector.shape_cast %13 : vector<8x1xf32> to vector<8x1xf32>
    %15 = vector.broadcast %14 : vector<8x1xf32> to vector<8x16xf32>
    %c0_17 = arith.constant 0 : index
    %c0_18 = arith.constant 0 : index
    %16 = vector.load %arg4[%c0_17, %c0_18] : memref<8x12xf32, #tpu.memory_space<vmem>>, vector<8x12xf32>
    %cst = arith.constant dense<0.000000e+00> : vector<8x16xf32>
    %17 = tpu.matmul %16, %12, %cst {dimension_numbers = #tpu.dot_dimension_numbers<[1], [0], [0], [1], [0, 0, 1, 1], [], []>} : vector<8x12xf32>, vector<12x16xf32>, vector<8x16xf32> -> vector<8x16xf32>
    %18 = arith.addf %15, %17 : vector<8x16xf32>
    %c0_19 = arith.constant 0 : index
    %c0_20 = arith.constant 0 : index
    %c0_21 = arith.constant 0 : index
    %19 = vector.load %arg6[%c0_19, %c0_20, %c0_21] : memref<1x12x16xf32, #tpu.memory_space<vmem>>, vector<1x4x16xf32>
    %20 = vector.shape_cast %19 : vector<1x4x16xf32> to vector<4x16xf32>
    %21 = vector.shape_cast %1 : vector<4x16xf32> to vector<1x4x16xf32>
    tpu.vector_store %arg6[%c0_19, %c0_20, %c0_21], %21 {strides = array<i32>} : memref<1x12x16xf32, #tpu.memory_space<vmem>>, vector<1x4x16xf32>,
    %c0_22 = arith.constant 0 : index
    %c4 = arith.constant 4 : index
    %c0_23 = arith.constant 0 : index
    %22 = vector.load %arg6[%c0_22, %c4, %c0_23] : memref<1x12x16xf32, #tpu.memory_space<vmem>>, vector<1x8x16xf32>
    %23 = vector.shape_cast %22 : vector<1x8x16xf32> to vector<8x16xf32>
    %24 = vector.shape_cast %18 : vector<8x16xf32> to vector<1x8x16xf32>
    tpu.vector_store %arg6[%c0_22, %c4, %c0_23], %24 {strides = array<i32>} : memref<1x12x16xf32, #tpu.memory_space<vmem>>, vector<1x8x16xf32>,
    return
  }
  func.func @transform_0(%arg0: i32, %arg1: i32) -> (i32, i32, i32) {
    %c0_i32 = arith.constant 0 : i32
    %c0_i32_0 = arith.constant 0 : i32
    return %arg0, %c0_i32, %arg1 : i32, i32, i32
  }
  func.func @transform_1(%arg0: i32, %arg1: i32) -> (i32, i32, i32, i32) {
    %c0_i32 = arith.constant 0 : i32
    %c0_i32_0 = arith.constant 0 : i32
    %c0_i32_1 = arith.constant 0 : i32
    return %arg0, %arg1, %c0_i32, %c0_i32_0 : i32, i32, i32, i32
  }
  func.func @transform_2(%arg0: i32, %arg1: i32) -> (i32, i32) {
    %c0_i32 = arith.constant 0 : i32
    %c0_i32_0 = arith.constant 0 : i32
    %c0_i32_1 = arith.constant 0 : i32
    return %c0_i32, %c0_i32_0 : i32, i32
  }
  func.func @transform_3(%arg0: i32, %arg1: i32) -> (i32, i32) {
    %c0_i32 = arith.constant 0 : i32
    %c0_i32_0 = arith.constant 0 : i32
    %c0_i32_1 = arith.constant 0 : i32
    return %c0_i32, %c0_i32_0 : i32, i32
  }
  func.func @transform_4(%arg0: i32, %arg1: i32) -> (i32, i32, i32) {
    %c0_i32 = arith.constant 0 : i32
    %c0_i32_0 = arith.constant 0 : i32
    return %arg0, %c0_i32, %arg1 : i32, i32, i32
  }
}

</mosaic_0001>

<llo_original>
// kernel: tpu_custom_call.1
$region0: #{tpu_custom_call.1}
  #allocation0 [shape = 'u32[]', space=smem, size = 0x4, offset = 0x4, fixed_abs, tag = 'smem constant byte address 0x4 - core index']
  #allocation1 [shape = 'u32[144,128]{1,0:T(1,128)}', space=vmem, size = 0x12000, scoped, tag = 'internal scratch']
  %s0 = inlined_call_operand.vmem [shape: f32[2,4,16], index: 0, kind: input, shape index: {}]
  %s1 = inlined_call_operand.vmem [shape: f32[2,1,4,2], index: 1, kind: input, shape index: {}]
  %s2 = inlined_call_operand.vmem [shape: f32[8,12], index: 2, kind: input, shape index: {}]
  %s3 = inlined_call_operand.vmem [shape: f32[8,1], index: 3, kind: input, shape index: {}]
  %s4 = inlined_call_operand.vmem [shape: f32[2,12,16], index: 4, kind: output, shape index: {}]
  %s5 = sld [smem:[#allocation0]]
  $region49: #{tpu_custom_call.1} parent=0
    _
  %s7 = ssub.s32 1, %s5
  %s8 = scalar_select 0, %s7, %s5
  loop: start=0, step=1, limit=4
  $region2: #{tpu_custom_call.1} parent=0 // loop_pre_header
    _
  $region3: #{tpu_custom_call.1} parent=0 // loop_header
    %s10 = sphi 0, %s14
    %p11 = scmp.ge.s32.totalorder %s10, 4
    %s17 = sphi 0, %s29
    %s18 = sphi 0, %s25
    %s19 = sphi 0, %s17
    %s20 = sphi 0, %s18
    %s21 = sphi 0, %s19
    %s22 = sphi 0, %s20
    %s34 = sphi 0, %s36
    %s37 = sphi 0, %s34
    %s38 = sphi 0, %s37
    %s54 = sphi 0, %s38
    %s62 = sphi 0, %s64
    %s65 = sphi 0, %s62
    %s66 = sphi 0, %s65
    %s82 = sphi 0, %s66
    %s86 = sphi 0, %s86
    %s88 = sphi 0, %s86
    %s89 = sphi 0, %s88
    %s103 = sphi 0, %s89
    %s107 = sphi 0, %s107
    %s109 = sphi 0, %s107
    %s110 = sphi 0, %s109
    %s124 = sphi 0, %s110
    %s132 = sphi 0, %s134
    %s135 = sphi 0, %s132
    %s136 = sphi 0, %s135
    %s152 = sphi 0, %s136
  $region4: #{tpu_custom_call.1} parent=0 // loop_header_branch
    %13 = sbr.rel (%p11) target = $region8
  $region5: #{tpu_custom_call.1} parent=0 // loop_body
    %s15 = ssub.s32 %s10, 1
    %s16 = ssub.s32 %s10, 2
    %s23 = sadd.s32 1, %s18
    %p24 = scmp.ge.s32.totalorder %s23, 1
    %s25 = scalar_select %p24, 0, %s23
    %s26 = sadd.s32 1, %s17
    %s27 = scalar_select %p24, %s26, %s17
    %p28 = scmp.ge.s32.totalorder %s27, 2
    %s29 = scalar_select %p28, 0, %s27
    %s30 = ssub.s32 %s17, %s29
    %s31 = ssub.s32 %s18, %s25
    %s32 = sor.u32 %s30, %s31
    %p33 = scmp.eq.s32.totalorder %s32, 0
    %s35 = sadd.s32 %s34, 1
    %s36 = scalar_select %p33, %s34, %s35
    %p39 = pneg %p33
    %p40 = scmp.eq.s32.totalorder %s10, 1
    %p41 = por %p39, %p40
    %p42 = scmp.ne.s32.totalorder %s34, %s37
    %p43 = scmp.eq.s32.totalorder %s10, 0
    %p44 = por %p42, %p43
    %p45 = scmp.ne.s32.totalorder %s34, %s37
    %p46 = scmp.eq.s32.totalorder %s15, 1
    %p47 = por %p45, %p46
    %p48 = scmp.ne.s32.totalorder %s37, %s38
    %p49 = scmp.eq.s32.totalorder %s15, 0
    %p50 = por %p48, %p49
    %p51 = scmp.ne.s32.totalorder %s37, %s38
    %p52 = scmp.eq.s32.totalorder %s16, 1
    %p53 = por %p51, %p52
    %p55 = scmp.ne.s32.totalorder %s38, %s54
    %p56 = scmp.eq.s32.totalorder %s16, 0
    %p57 = por %p55, %p56
    %s58 = ssub.s32 %s17, %s29
    %s59 = ssub.s32 %s18, %s25
    %s60 = sor.u32 %s58, %s59
    %p61 = scmp.eq.s32.totalorder %s60, 0
    %s63 = sadd.s32 %s62, 1
    %s64 = scalar_select %p61, %s62, %s63
    %p67 = pneg %p61
    %p68 = scmp.eq.s32.totalorder %s10, 1
    %p69 = por %p67, %p68
    %p70 = scmp.ne.s32.totalorder %s62, %s65
    %p71 = scmp.eq.s32.totalorder %s10, 0
    %p72 = por %p70, %p71
    %p73 = scmp.ne.s32.totalorder %s62, %s65
    %p74 = scmp.eq.s32.totalorder %s15, 1
    %p75 = por %p73, %p74
    %p76 = scmp.ne.s32.totalorder %s65, %s66
    %p77 = scmp.eq.s32.totalorder %s15, 0
    %p78 = por %p76, %p77
    %p79 = scmp.ne.s32.totalorder %s65, %s66
    %p80 = scmp.eq.s32.totalorder %s16, 1
    %p81 = por %p79, %p80
    %p83 = scmp.ne.s32.totalorder %s66, %s82
    %p84 = scmp.eq.s32.totalorder %s16, 0
    %p85 = por %p83, %p84
    %s87 = sadd.s32 %s86, 1
    %p90 = scmp.eq.s32.totalorder %s10, 1
    %p91 = scmp.ne.s32.totalorder %s86, %s88
    %p92 = scmp.eq.s32.totalorder %s10, 0
    %p93 = por %p91, %p92
    %p94 = scmp.ne.s32.totalorder %s86, %s88
    %p95 = scmp.eq.s32.totalorder %s15, 1
    %p96 = por %p94, %p95
    %p97 = scmp.ne.s32.totalorder %s88, %s89
    %p98 = scmp.eq.s32.totalorder %s15, 0
    %p99 = por %p97, %p98
    %p100 = scmp.ne.s32.totalorder %s88, %s89
    %p101 = scmp.eq.s32.totalorder %s16, 1
    %p102 = por %p100, %p101
    %p104 = scmp.ne.s32.totalorder %s89, %s103
    %p105 = scmp.eq.s32.totalorder %s16, 0
    %p106 = por %p104, %p105
    %s108 = sadd.s32 %s107, 1
    %p111 = scmp.eq.s32.totalorder %s10, 1
    %p112 = scmp.ne.s32.totalorder %s107, %s109
    %p113 = scmp.eq.s32.totalorder %s10, 0
    %p114 = por %p112, %p113
    %p115 = scmp.ne.s32.totalorder %s107, %s109
    %p116 = scmp.eq.s32.totalorder %s15, 1
    %p117 = por %p115, %p116
    %p118 = scmp.ne.s32.totalorder %s109, %s110
    %p119 = scmp.eq.s32.totalorder %s15, 0
    %p120 = por %p118, %p119
    %p121 = scmp.ne.s32.totalorder %s109, %s110
    %p122 = scmp.eq.s32.totalorder %s16, 1
    %p123 = por %p121, %p122
    %p125 = scmp.ne.s32.totalorder %s110, %s124
    %p126 = scmp.eq.s32.totalorder %s16, 0
    %p127 = por %p125, %p126
    %s128 = ssub.s32 %s17, %s29
    %s129 = ssub.s32 %s18, %s25
    %s130 = sor.u32 %s128, %s129
    %p131 = scmp.eq.s32.totalorder %s130, 0
    %s133 = sadd.s32 %s132, 1
    %s134 = scalar_select %p131, %s132, %s133
    %p137 = pneg %p131
    %p138 = scmp.eq.s32.totalorder %s10, 1
    %p139 = por %p137, %p138
    %p140 = scmp.ne.s32.totalorder %s132, %s135
    %p141 = scmp.eq.s32.totalorder %s10, 0
    %p142 = por %p140, %p141
    %p143 = scmp.ne.s32.totalorder %s132, %s135
    %p144 = scmp.eq.s32.totalorder %s15, 1
    %p145 = por %p143, %p144
    %p146 = scmp.ne.s32.totalorder %s135, %s136
    %p147 = scmp.eq.s32.totalorder %s15, 0
    %p148 = por %p146, %p147
    %p149 = scmp.ne.s32.totalorder %s135, %s136
    %p150 = scmp.eq.s32.totalorder %s16, 1
    %p151 = por %p149, %p150
    %p153 = scmp.ne.s32.totalorder %s136, %s152
    %p154 = scmp.eq.s32.totalorder %s16, 0
    %p155 = por %p153, %p154
    %p156 = scmp.le.s32.totalorder 1, %s10
    %p157 = scmp.lt.s32.totalorder %s10, 3
    %p158 = pnand %p156, %p157
    %p159 = pneg %p158
    // Predicated region
    $region9: #{tpu_custom_call.1} parent=5 // pred_check
      _
    $region10: #{tpu_custom_call.1} parent=5 // pred_check_branch
      %161 = sbr.rel (%p158) target = $region12
    $region11: #{tpu_custom_call.1} parent=5 // pred_region
      %s162 = ssub.s32 %s10, 1
      // Predicated region
      $region13: #{tpu_custom_call.1} parent=11 // pred_check
        %p163 = pneg %p99
      $region14: #{tpu_custom_call.1} parent=11 // pred_check_branch
        %165 = sbr.rel (%p163) target = $region16
      $region15: #{tpu_custom_call.1} parent=11 // pred_region
        _
      $region16: #{tpu_custom_call.1} parent=11 // pred_fallthru
        _
      // Predicated region
      $region17: #{tpu_custom_call.1} parent=11 // pred_check
        %p166 = pneg %p120
      $region18: #{tpu_custom_call.1} parent=11 // pred_check_branch
        %168 = sbr.rel (%p166) target = $region20
      $region19: #{tpu_custom_call.1} parent=11 // pred_region
        _
      $region20: #{tpu_custom_call.1} parent=11 // pred_fallthru
        _
    $region12: #{tpu_custom_call.1} parent=5 // pred_fallthru
      _
    %p169 = scmp.lt.s32.totalorder %s10, 2
    // Predicated region
    $region21: #{tpu_custom_call.1} parent=5 // pred_check
      %p170 = pneg %p169
    $region22: #{tpu_custom_call.1} parent=5 // pred_check_branch
      %172 = sbr.rel (%p170) target = $region24
    $region23: #{tpu_custom_call.1} parent=5 // pred_region
      // Predicated region
      $region25: #{tpu_custom_call.1} parent=23 // pred_check
        %p173 = pneg %p44
      $region26: #{tpu_custom_call.1} parent=23 // pred_check_branch
        %175 = sbr.rel (%p173) target = $region28
      $region27: #{tpu_custom_call.1} parent=23 // pred_region
        %p176 = scmp.lt.s32.totalorder %s17, 1
        %s177 = scalar_select %p176, %s17, 1
        %p178 = scmp.lt.s32.totalorder %s18, 0
        %s179 = scalar_select %p178, %s18, 0
        %s180 = sadd.s32 %s179, %s177
        %s181 = smul.addr %s180, 4
        %s182 = scalar_lea.vmem %s0, %s181
      $region28: #{tpu_custom_call.1} parent=23 // pred_fallthru
        _
      // Predicated region
      $region29: #{tpu_custom_call.1} parent=23 // pred_check
        %p183 = pneg %p72
      $region30: #{tpu_custom_call.1} parent=23 // pred_check_branch
        %185 = sbr.rel (%p183) target = $region32
      $region31: #{tpu_custom_call.1} parent=23 // pred_region
        %p186 = scmp.lt.s32.totalorder %s17, 1
        %s187 = scalar_select %p186, %s17, 1
        %p188 = scmp.lt.s32.totalorder %s18, 0
        %s189 = scalar_select %p188, %s18, 0
        %s190 = sadd.s32 %s189, %s187
        %s191 = smul.addr %s190, 4
        %s192 = scalar_lea.vmem %s1, %s191
      $region32: #{tpu_custom_call.1} parent=23 // pred_fallthru
        _
    $region24: #{tpu_custom_call.1} parent=5 // pred_fallthru
      _
    %p193 = scmp.le.s32.totalorder 1, %s10
    %p194 = scmp.lt.s32.totalorder %s10, 3
    %p195 = pnand %p193, %p194
    %p196 = pneg %p195
    // Predicated region
    $region33: #{tpu_custom_call.1} parent=5 // pred_check
      _
    $region34: #{tpu_custom_call.1} parent=5 // pred_check_branch
      %198 = sbr.rel (%p195) target = $region36
    $region35: #{tpu_custom_call.1} parent=5 // pred_region
      %s199 = ssub.s32 %s10, 1
      %p200 = scmp.lt.s32.totalorder %s19, 1
      %s201 = scalar_select %p200, %s19, 1
      %p202 = scmp.lt.s32.totalorder %s20, 0
      %s203 = scalar_select %p202, %s20, 0
      %s204 = sadd.s32 %s203, %s201
      %s205 = smul.addr %s204, 4
      %s206 = scalar_lea.vmem %s0, %s205
      %p207 = pneg %p50
      %p208 = pneg %p47
      %p209 = scmp.lt.s32.totalorder %s19, 1
      %s210 = scalar_select %p209, %s19, 1
      %p211 = scmp.lt.s32.totalorder %s20, 0
      %s212 = scalar_select %p211, %s20, 0
      %s213 = sadd.s32 %s212, %s210
      %s214 = smul.addr %s213, 4
      %s215 = scalar_lea.vmem %s1, %s214
      %p216 = pneg %p78
      %p217 = pneg %p75
      %p218 = pneg %p99
      %p219 = pneg %p96
      %p220 = pneg %p120
      %p221 = pneg %p117
      %p222 = pneg %p148
      %p223 = pneg %p145
      %p224 = scmp.lt.s32.totalorder %s19, 1
      %s225 = scalar_select %p224, %s19, 1
      %p226 = scmp.lt.s32.totalorder %s20, 0
      %s227 = scalar_select %p226, %s20, 0
      %s228 = smul.addr %s225, 2
      %s229 = sadd.s32 %s227, %s228
      %s230 = smul.addr %s229, 8
      %s231 = scalar_lea.vmem %s4, %s230
      %p232 = scmp.lt.s32.totalorder %s19, 1
      %s233 = scalar_select %p232, %s19, 1
      %p234 = scmp.lt.s32.totalorder %s20, 0
      %s235 = scalar_select %p234, %s20, 0
      %s236 = sadd.s32 %s235, %s233
      %s237 = smul.addr %s236, 4
      %s238 = scalar_lea.vmem %s0, %s237
      %p239 = scmp.lt.s32.totalorder %s19, 1
      %s240 = scalar_select %p239, %s19, 1
      %p241 = scmp.lt.s32.totalorder %s20, 0
      %s242 = scalar_select %p241, %s20, 0
      %s243 = sadd.s32 %s242, %s240
      %s244 = smul.addr %s243, 4
      %s245 = scalar_lea.vmem %s1, %s244
      %p246 = scmp.lt.s32.totalorder %s19, 1
      %s247 = scalar_select %p246, %s19, 1
      %p248 = scmp.lt.s32.totalorder %s20, 0
      %s249 = scalar_select %p248, %s20, 0
      %s250 = smul.addr %s247, 2
      %s251 = sadd.s32 %s249, %s250
      %s252 = smul.addr %s251, 8
      %s253 = scalar_lea.vmem %s4, %s252
      %v254 = vld [vmem:[%s238] sm:$0xf]
      %v255 = vld [vmem:[%s245] sm:$0xf]
      %257 = vrot.lane.b32.xlu0 %v254, 1
      %v258 = vpop.permute.xlu0 %257
      %vm260 = vcmask 7168
      %v261 = vsel %vm260, %v255, %v258
      %262 = vrot.lane.b32.xlu0 %v254, 127
      %v263 = vpop.permute.xlu0 %262
      %266 = vrot.lane.b32.xlu0 %v255, 14
      %v267 = vpop.permute.xlu0 %266
      %vm269 = vcmask 121856
      %v270 = vsel %vm269, %v263, %v267
      %v271 = vrot.slane %v254, 4
      %vm273 = vcmask 1043456
      %v274 = vsel %vm273, %v261, %v271
      %v275 = vld [vmem:[%s3] sm:$0xff]
      %277 = vset.pattern.permute.xlu0 0
      %278 = vperm.xlu0 %277, %v275
      %v279 = vpop.permute.xlu0 %278
      %v281 = vld [vmem:[%s2] sm:$0xff]
      %vm282 = vcmask 97280
      %v284 = vsel %vm282, %v281, 0
      %v287 = vsel %vm273, %v270, 0
      %289 = vmatprep.subr.mxu0 0.0
      %290 = vmatpush1.msra.mxu0 %v274
      %291 = vmatprep.subr.mxu0 0.0
      %292 = vmatpush1.msra.mxu0 %v287
      %293 = vmatprep.subr.mxu0 0.0
      %294 = vmatpush1.msra.mxu0 0.0
      %295 = vmatprep.subr.mxu0 0.0
      %296 = vmatpush1.msra.mxu0 0.0
      %297 = vmatprep.subr.mxu0 0.0
      %298 = vmatpush1.msra.mxu0 0.0
      %299 = vmatprep.subr.mxu0 0.0
      %300 = vmatpush1.msra.mxu0 0.0
      %301 = vmatprep.subr.mxu0 0.0
      %302 = vmatpush1.msra.mxu0 0.0
      %303 = vmatprep.subr.mxu0 0.0
      %304 = vmatpush1.msra.mxu0 0.0
      %305 = vmatprep.subr.mxu0 0.0
      %306 = vmatpush1.msra.mxu0 0.0
      %307 = vmatprep.subr.mxu0 0.0
      %308 = vmatpush1.msra.mxu0 0.0
      %309 = vmatprep.subr.mxu0 0.0
      %310 = vmatpush1.msra.mxu0 0.0
      %311 = vmatprep.subr.mxu0 0.0
      %312 = vmatpush1.msra.mxu0 0.0
      %313 = vmatprep.subr.mxu0 0.0
      %314 = vmatpush1.msra.mxu0 0.0
      %315 = vmatprep.subr.mxu0 0.0
      %316 = vmatpush1.msra.mxu0 0.0
      %317 = vmatprep.subr.mxu0 0.0
      %318 = vmatpush1.msra.mxu0 0.0
      %319 = vmatprep.subr.mxu0 0.0
      %320 = vmatpush1.msra.mxu0 0.0
      %321 = vmatprep.subr.mxu0 0.0
      %322 = vmatpush1.msra.mxu0 0.0
      %323 = vmatprep.subr.mxu0 0.0
      %324 = vmatpush1.msra.mxu0 0.0
      %325 = vmatprep.subr.mxu0 0.0
      %326 = vmatpush1.msra.mxu0 0.0
      %327 = vmatprep.subr.mxu0 0.0
      %328 = vmatpush1.msra.mxu0 0.0
      %329 = vmatprep.subr.mxu0 0.0
      %330 = vmatpush1.msra.mxu0 0.0
      %331 = vmatprep.subr.mxu0 0.0
      %332 = vmatpush1.msra.mxu0 0.0
      %333 = vmatprep.subr.mxu0 0.0
      %334 = vmatpush1.msra.mxu0 0.0
      %335 = vmatprep.subr.mxu0 0.0
      %336 = vmatpush1.msra.mxu0 0.0
      %337 = vmatprep.subr.mxu0 0.0
      %338 = vmatpush1.msra.mxu0 0.0
      %339 = vmatprep.subr.mxu0 0.0
      %340 = vmatpush1.msra.mxu0 0.0
      %341 = vmatprep.subr.mxu0 0.0
      %342 = vmatpush1.msra.mxu0 0.0
      %343 = vmatprep.subr.mxu0 0.0
      %344 = vmatpush1.msra.mxu0 0.0
      %345 = vmatprep.subr.mxu0 0.0
      %346 = vmatpush1.msra.mxu0 0.0
      %347 = vmatprep.subr.mxu0 0.0
      %348 = vmatpush1.msra.mxu0 0.0
      %349 = vmatprep.subr.mxu0 0.0
      %350 = vmatpush1.msra.mxu0 0.0
      %351 = vmatprep.subr.mxu0 0.0
      %352 = vmatpush1.msra.mxu0 0.0
      %353 = vmatprep.mubr.f32.mxu0 0.0
      %354 = vmatmul.mubr.f32.gmra.mrb[0].mxu0 %v284
      %v355 = vpop.f32.mrb[0].mxu0
      %v356 = vadd.f32 0.0, %v355
      %v357 = vpop.f32.mrb[0].mxu0
      %358 = vdwg.mxu0
      %v359 = vadd.f32 %v279, %v356
      %vm360 = vcmask 125952
      %361 = vst.msk [vmem:[%s253] sm:$0xf] %vm360, %v254
      %vm362 = vcmask 130048
      %363 = vst.msk [vmem:[%s253 + $0x4] sm:$0xff] %vm362, %v359
      %p364 = scmp.lt.s32.totalorder %s19, 1
      %s365 = scalar_select %p364, %s19, 1
      %p366 = scmp.lt.s32.totalorder %s20, 0
      %s367 = scalar_select %p366, %s20, 0
      %s368 = smul.addr %s365, 2
      %s369 = sadd.s32 %s367, %s368
      %s370 = smul.addr %s369, 8
      %s371 = scalar_lea.vmem %s4, %s370
      // Predicated region
      $region37: #{tpu_custom_call.1} parent=35 // pred_check
        %p372 = pneg %p145
      $region38: #{tpu_custom_call.1} parent=35 // pred_check_branch
        %374 = sbr.rel (%p372) target = $region40
      $region39: #{tpu_custom_call.1} parent=35 // pred_region
        _
      $region40: #{tpu_custom_call.1} parent=35 // pred_fallthru
        _
    $region36: #{tpu_custom_call.1} parent=5 // pred_fallthru
      _
    %p375 = scmp.le.s32.totalorder 2, %s10
    // Predicated region
    $region41: #{tpu_custom_call.1} parent=5 // pred_check
      %p376 = pneg %p375
    $region42: #{tpu_custom_call.1} parent=5 // pred_check_branch
      %378 = sbr.rel (%p376) target = $region44
    $region43: #{tpu_custom_call.1} parent=5 // pred_region
      %s379 = ssub.s32 %s10, 2
      // Predicated region
      $region45: #{tpu_custom_call.1} parent=43 // pred_check
        %p380 = pneg %p151
      $region46: #{tpu_custom_call.1} parent=43 // pred_check_branch
        %382 = sbr.rel (%p380) target = $region48
      $region47: #{tpu_custom_call.1} parent=43 // pred_region
        %p383 = scmp.lt.s32.totalorder %s21, 1
        %s384 = scalar_select %p383, %s21, 1
        %p385 = scmp.lt.s32.totalorder %s22, 0
        %s386 = scalar_select %p385, %s22, 0
        %s387 = smul.addr %s384, 2
        %s388 = sadd.s32 %s386, %s387
        %s389 = smul.addr %s388, 8
        %s390 = scalar_lea.vmem %s4, %s389
      $region48: #{tpu_custom_call.1} parent=43 // pred_fallthru
        _
    $region44: #{tpu_custom_call.1} parent=5 // pred_fallthru
      _
  $region6: #{tpu_custom_call.1} parent=0 // loop_footer
    %s14 = sadd.s32 1, %s10
  $region7: #{tpu_custom_call.1} parent=0 // loop_footer_branch
    %9 = sbr.rel target = $region3
  $region8: #{tpu_custom_call.1} parent=0 // loop_exit
    _

</llo_original>
